<compile_context>
chip_gen: v6e
topology: v6e:2x2x1
jax: 0.10.0
libtpu: 0.0.40
codegen_flags: <defaults>
</compile_context>

<pallas_src>
import functools

import jax
import jax.numpy as jnp
from jax.experimental import pallas as pl
from jax.experimental.pallas import tpu as pltpu

LANE = 128
_VMEM_LIMIT_BYTES = 48 * 1024 * 1024      # <= ~48 MiB: safe on v7x, ample on v5e/v6e
_RESIDENT_BYTES_BUDGET = 8 * 1024 * 1024  # resident XW/HW2 cap (<=16 MiB if buffered x2)


def _round_up(x, m):
    return ((x + m - 1) // m) * m


def _pad2d(a, rows, cols, dtype=None):
    out = jnp.pad(a, ((0, rows - a.shape[0]), (0, cols - a.shape[1])))
    if dtype is not None:
        out = out.astype(dtype)
    return out


def _pick_tile(n_pad, cap):
    """Largest multiple of LANE that divides n_pad and is <= cap."""
    t = max(LANE, (min(cap, n_pad) // LANE) * LANE)
    while n_pad % t:
        t -= LANE
    return t


def _pick_row_tile(n_pad, cap):
    """Row tile <= cap; keep >= 2 row tiles when possible (v7x megacore split)."""
    t = _pick_tile(n_pad, cap)
    if n_pad // t < 2:
        t = n_pad // 2  # n_pad is a multiple of 128, so this stays sublane-aligned
    return t


def _ahat_spec(tile_row, tile_k, n_steps):
    """Ahat BlockSpec; 3-deep buffering for large grids to hide DMA jitter."""
    idx = lambda i, k: (i, k)
    if n_steps >= 3:
        try:
            return pl.BlockSpec((tile_row, tile_k), idx,
                                pipeline_mode=pl.Buffered(3))
        except (TypeError, AttributeError):
            pass  # older jax without pipeline_mode/Buffered: default double-buffer
    return pl.BlockSpec((tile_row, tile_k), idx)


def _compiler_params(dims):
    return pltpu.CompilerParams(
        dimension_semantics=dims, vmem_limit_bytes=_VMEM_LIMIT_BYTES
    )


# ------------------------------ Pallas kernels ------------------------------ #
def mix_kernel(x_ref, w_ref, o_ref):
    """Feature mixing: one row-tile of X @ W (bf16 MXU inputs, f32 accumulate)."""
    o_ref[...] = jnp.dot(
        x_ref[...], w_ref[...], preferred_element_type=jnp.float32
    ).astype(o_ref.dtype)


def agg1_fused_kernel(ahat_ref, xw_ref, b1_ref, w2_ref, o_ref, acc_ref, *,
                      tile_k, xw_resident):
    """Row-tile of relu(Ahat @ XW1 + b1) @ W2; K-tiled with f32 accumulator."""
    k = pl.program_id(1)

    @pl.when(k == 0)
    def _():
        acc_ref[...] = jnp.zeros_like(acc_ref)

    if xw_resident:
        start = pl.multiple_of(k * tile_k, tile_k)
        xw = xw_ref[pl.ds(start, tile_k), :]
    else:
        xw = xw_ref[...]

    acc_ref[...] += jnp.dot(ahat_ref[...], xw, preferred_element_type=jnp.float32)

    @pl.when(k == pl.num_programs(1) - 1)
    def _():
        h = jnp.maximum(acc_ref[...] + b1_ref[...], 0.0)  # f32 bias + relu
        o_ref[...] = jnp.dot(
            h.astype(w2_ref.dtype), w2_ref[...], preferred_element_type=jnp.float32
        ).astype(o_ref.dtype)


def agg2_kernel(ahat_ref, hw_ref, b2_ref, o_ref, *, tile_k, hw_resident):
    """Row-tile of Ahat @ HW2 + b2, accumulated directly into the f32 output."""
    k = pl.program_id(1)

    @pl.when(k == 0)
    def _():
        o_ref[...] = jnp.broadcast_to(b2_ref[...], o_ref.shape).astype(o_ref.dtype)

    if hw_resident:
        start = pl.multiple_of(k * tile_k, tile_k)
        hw = hw_ref[pl.ds(start, tile_k), :]
    else:
        hw = hw_ref[...]

    o_ref[...] += jnp.dot(ahat_ref[...], hw, preferred_element_type=jnp.float32)


# ------------------------------- pallas_call wrappers ----------------------- #
def _mix(x_p, w_p, *, out_dtype):
    n_pad, f_pad = x_p.shape
    h_pad = w_p.shape[1]
    tile_m = _pick_row_tile(n_pad, 1024)  # large row blocks, weight is resident
    return pl.pallas_call(
        mix_kernel,
        out_shape=jax.ShapeDtypeStruct((n_pad, h_pad), out_dtype),
        grid_spec=pltpu.PrefetchScalarGridSpec(
            num_scalar_prefetch=0,
            grid=(n_pad // tile_m,),
            in_specs=[
                pl.BlockSpec((tile_m, f_pad), lambda i: (i, 0)),
                pl.BlockSpec((f_pad, h_pad), lambda i: (0, 0)),  # resident weight
            ],
            out_specs=pl.BlockSpec((tile_m, h_pad), lambda i: (i, 0)),
        ),
        compiler_params=_compiler_params(("parallel",)),
    )(x_p, w_p)


def _aggregate_relu_mix(ahat_p, xw_p, b1_p, w2_p, *, out_dtype):
    """HW2 = relu(Ahat @ XW1 + b1) @ W2  (layer-1 aggregate + fused layer-2 mix)."""
    n_pad = ahat_p.shape[0]
    h_pad = xw_p.shape[1]
    o_pad = w2_p.shape[1]
    tile_row = _pick_row_tile(n_pad, 512)
    tile_k = _pick_tile(n_pad, 2048)
    n_steps = (n_pad // tile_row) * (n_pad // tile_k)

    xw_resident = xw_p.size * xw_p.dtype.itemsize <= _RESIDENT_BYTES_BUDGET
    if xw_resident:
        xw_spec = pl.BlockSpec((n_pad, h_pad), lambda i, k: (0, 0))  # DMA'd once
    else:
        xw_spec = pl.BlockSpec((tile_k, h_pad), lambda i, k: (k, 0))

    kernel = functools.partial(
        agg1_fused_kernel, tile_k=tile_k, xw_resident=xw_resident
    )
    return pl.pallas_call(
        kernel,
        out_shape=jax.ShapeDtypeStruct((n_pad, o_pad), out_dtype),
        grid_spec=pltpu.PrefetchScalarGridSpec(
            num_scalar_prefetch=0,
            grid=(n_pad // tile_row, n_pad // tile_k),
            in_specs=[
                _ahat_spec(tile_row, tile_k, n_steps),            # Ahat stream
                xw_spec,                                          # XW1
                pl.BlockSpec((1, h_pad), lambda i, k: (0, 0)),    # b1 (resident)
                pl.BlockSpec((h_pad, o_pad), lambda i, k: (0, 0)),  # W2 (resident)
            ],
            out_specs=pl.BlockSpec((tile_row, o_pad), lambda i, k: (i, 0)),
            scratch_shapes=[pltpu.VMEM((tile_row, h_pad), jnp.float32)],
        ),
        compiler_params=_compiler_params(("parallel", "arbitrary")),
    )(ahat_p, xw_p, b1_p, w2_p)


def _aggregate_out(ahat_p, hw_p, b2_p):
    """OUT = Ahat @ HW2 + b2, f32 output used directly as the accumulator."""
    n_pad = ahat_p.shape[0]
    o_pad = hw_p.shape[1]
    tile_row = _pick_row_tile(n_pad, 512)
    tile_k = _pick_tile(n_pad, 2048)
    n_steps = (n_pad // tile_row) * (n_pad // tile_k)

    hw_resident = hw_p.size * hw_p.dtype.itemsize <= _RESIDENT_BYTES_BUDGET
    if hw_resident:
        hw_spec = pl.BlockSpec((n_pad, o_pad), lambda i, k: (0, 0))  # DMA'd once
    else:
        hw_spec = pl.BlockSpec((tile_k, o_pad), lambda i, k: (k, 0))

    kernel = functools.partial(agg2_kernel, tile_k=tile_k, hw_resident=hw_resident)
    return pl.pallas_call(
        kernel,
        out_shape=jax.ShapeDtypeStruct((n_pad, o_pad), jnp.float32),
        grid_spec=pltpu.PrefetchScalarGridSpec(
            num_scalar_prefetch=0,
            grid=(n_pad // tile_row, n_pad // tile_k),
            in_specs=[
                _ahat_spec(tile_row, tile_k, n_steps),          # Ahat stream
                hw_spec,                                        # HW2
                pl.BlockSpec((1, o_pad), lambda i, k: (0, 0)),  # b2 (resident)
            ],
            out_specs=pl.BlockSpec((tile_row, o_pad), lambda i, k: (i, 0)),
        ),
        compiler_params=_compiler_params(("parallel", "arbitrary")),
    )(ahat_p, hw_p, b2_p)


def gnn_forward_pallas(ahat, x, w1, b1, w2, b2):
    """relu(Ahat @ (X @ W1) + b1)  ->  Ahat @ (H @ W2) + b2."""
    n = x.shape[0]
    out_channels = w2.shape[1]

    # Adaptive node padding: lane-aligned only (not tile-aligned).
    n_pad = _round_up(n, LANE)
    f_pad = _round_up(x.shape[1], LANE)
    h_pad = _round_up(w1.shape[1], LANE)
    o_pad = _round_up(out_channels, LANE)

    # bf16 MXU operands (zero padding keeps results exact for the real rows).
    ahat_p = _pad2d(ahat, n_pad, n_pad, jnp.bfloat16)
    x_p = _pad2d(x, n_pad, f_pad, jnp.bfloat16)
    w1_p = _pad2d(w1, f_pad, h_pad, jnp.bfloat16)
    w2_p = _pad2d(w2, h_pad, o_pad, jnp.bfloat16)
    b1_p = _pad2d(b1, 1, h_pad, jnp.float32)
    b2_p = _pad2d(b2, 1, o_pad, jnp.float32)

    xw1 = _mix(x_p, w1_p, out_dtype=jnp.bfloat16)                       # X @ W1
    hw2 = _aggregate_relu_mix(ahat_p, xw1, b1_p, w2_p,
                              out_dtype=jnp.bfloat16)                   # relu(.)+b1 @ W2
    out_p = _aggregate_out(ahat_p, hw2, b2_p)                           # Ahat @ HW2 + b2

    # Padded Ahat rows are zero (outputs there are bias-only garbage) and padded
    # Ahat columns are zero (that garbage never feeds real rows); slice drops it.
    return out_p[:n, :out_channels]


# --------------------------------- JAX glue --------------------------------- #
def normalized_adjacency(edge_index, num_nodes):
    """Dense GCN adjacency:  D^{-1/2} (A + I) D^{-1/2}  (PyG message direction)."""
    src = edge_index[0]
    dst = edge_index[1]
    loops = jnp.arange(num_nodes, dtype=edge_index.dtype)
    src = jnp.concatenate([src, loops])
    dst = jnp.concatenate([dst, loops])

    a = jnp.zeros((num_nodes, num_nodes), dtype=jnp.float32)
    a = a.at[dst, src].add(1.0)

    deg = a.sum(axis=1)
    dinv_sqrt = jnp.where(deg > 0, 1.0 / jnp.sqrt(deg), 0.0)
    return dinv_sqrt[:, None] * a * dinv_sqrt[None, :]


def init_params(key, num_node_features, hidden_channels, out_channels):
    """Glorot weights, zero biases (GCNConv default)."""
    k1, k2 = jax.random.split(key)

    def glorot(k, fan_in, fan_out):
        limit = jnp.sqrt(6.0 / (fan_in + fan_out))
        return jax.random.uniform(
            k, (fan_in, fan_out), jnp.float32, minval=-limit, maxval=limit
        )

    w1 = glorot(k1, num_node_features, hidden_channels)
    b1 = jnp.zeros((1, hidden_channels), jnp.float32)
    w2 = glorot(k2, hidden_channels, out_channels)
    b2 = jnp.zeros((1, out_channels), jnp.float32)
    return w1, b1, w2, b2


def gnn_reference_f32(ahat, x, w1, b1, w2, b2):
    """Pure-f32 reference of the module forward."""
    h = jnp.maximum(ahat @ (x @ w1) + b1, 0.0)
    return ahat @ (h @ w2) + b2


def gnn_reference_bf16(ahat, x, w1, b1, w2, b2):
    """Reference mirroring the kernel's bf16-input / f32-accumulate dtype flow."""
    ab = ahat.astype(jnp.bfloat16)
    xw = jnp.dot(x.astype(jnp.bfloat16), w1.astype(jnp.bfloat16),
                 preferred_element_type=jnp.float32).astype(jnp.bfloat16)
    h = jnp.maximum(jnp.dot(ab, xw, preferred_element_type=jnp.float32) + b1, 0.0)
    hw = jnp.dot(h.astype(jnp.bfloat16), w2.astype(jnp.bfloat16),
                 preferred_element_type=jnp.float32).astype(jnp.bfloat16)
    return jnp.dot(ab, hw, preferred_element_type=jnp.float32) + b2


# ----------------------------------- main ----------------------------------- #
if __name__ == "__main__":
    num_nodes = 16
    num_node_features = 8
    hidden_channels = 32
    out_channels = 8
    num_edges = 32

    key = jax.random.PRNGKey(0)
    k_x, k_e, k_p = jax.random.split(key, 3)

    x = jax.random.normal(k_x, (num_nodes, num_node_features), jnp.float32)
    edge_index = jax.random.randint(
        k_e, (2, num_edges), minval=0, maxval=num_nodes, dtype=jnp.int32
    )

    ahat = normalized_adjacency(edge_index, num_nodes)
    w1, b1, w2, b2 = init_params(
        k_p, num_node_features, hidden_channels, out_channels
    )

    out = gnn_forward_pallas(ahat, x, w1, b1, w2, b2)
    out = jax.block_until_ready(out)
    assert out.shape == (num_nodes, out_channels)

    # Tight check against a dtype-mirrored reference, loose check against f32.
    ref_bf = gnn_reference_bf16(ahat, x, w1, b1, w2, b2)
    ref_f32 = gnn_reference_f32(ahat, x, w1, b1, w2, b2)
    assert jnp.allclose(out, ref_bf, atol=1e-2, rtol=1e-2)
    assert jnp.allclose(out, ref_f32, atol=5e-2, rtol=5e-2)

    print("KERNEL_OK")
</pallas_src>

<mosaic_0001>
module attributes {stable_mosaic.version = 11 : i64} {
  func.func @mix_kernel(%arg0: i32, %arg1: memref<64x128xbf16, #tpu.memory_space<vmem>>, %arg2: memref<128x128xbf16, #tpu.memory_space<vmem>>, %arg3: memref<64x128xbf16, #tpu.memory_space<vmem>>) attributes {dimension_semantics = [#tpu.dimension_semantics<parallel>], iteration_bounds = array<i64: 2>, scalar_prefetch = 0 : i64, scratch_operands = 0 : i64, tpu.core_type = #tpu.core_type<tc>, window_params = [{transform_indices = @transform_0, window_bounds = array<i64: 64, 128>}, {pipeline_mode = #tpu.pipeline_mode<synchronous>, transform_indices = @transform_1, window_bounds = array<i64: 128, 128>}, {transform_indices = @transform_2, window_bounds = array<i64: 64, 128>}]} {
    %c0 = arith.constant 0 : index
    %c0_0 = arith.constant 0 : index
    %0 = vector.load %arg1[%c0, %c0_0] : memref<64x128xbf16, #tpu.memory_space<vmem>>, vector<64x128xbf16>
    %c0_1 = arith.constant 0 : index
    %c0_2 = arith.constant 0 : index
    %1 = vector.load %arg2[%c0_1, %c0_2] : memref<128x128xbf16, #tpu.memory_space<vmem>>, vector<128x128xbf16>
    %cst = arith.constant dense<0.000000e+00> : vector<64x128xf32>
    %2 = tpu.matmul %0, %1, %cst {dimension_numbers = #tpu.dot_dimension_numbers<[1], [0], [0], [1], [0, 0, 1, 1], [], []>} : vector<64x128xbf16>, vector<128x128xbf16>, vector<64x128xf32> -> vector<64x128xf32>
    %3 = arith.truncf %2 : vector<64x128xf32> to vector<64x128xbf16>
    %c0_3 = arith.constant 0 : index
    %c0_4 = arith.constant 0 : index
    %4 = vector.load %arg3[%c0_3, %c0_4] : memref<64x128xbf16, #tpu.memory_space<vmem>>, vector<64x128xbf16>
    tpu.vector_store %arg3[%c0_3, %c0_4], %3 {strides = array<i32>} : memref<64x128xbf16, #tpu.memory_space<vmem>>, vector<64x128xbf16>,
    return
  }
  func.func @transform_0(%arg0: i32) -> (i32, i32) {
    %c0_i32 = arith.constant 0 : i32
    %c0_i32_0 = arith.constant 0 : i32
    return %arg0, %c0_i32 : i32, i32
  }
  func.func @transform_1(%arg0: i32) -> (i32, i32) {
    %c0_i32 = arith.constant 0 : i32
    %c0_i32_0 = arith.constant 0 : i32
    %c0_i32_1 = arith.constant 0 : i32
    return %c0_i32, %c0_i32_0 : i32, i32
  }
  func.func @transform_2(%arg0: i32) -> (i32, i32) {
    %c0_i32 = arith.constant 0 : i32
    %c0_i32_0 = arith.constant 0 : i32
    return %arg0, %c0_i32 : i32, i32
  }
}

</mosaic_0001>

<llo_original>
// kernel: tpu_custom_call.1
$region0: #{tpu_custom_call.1}
  #allocation0 [shape = 'u32[]', space=smem, size = 0x4, offset = 0x4, fixed_abs, tag = 'smem constant byte address 0x4 - core index']
  #allocation1 [shape = 'u32[144,128]{1,0:T(1,128)}', space=vmem, size = 0x12000, scoped, tag = 'internal scratch']
  %s0 = inlined_call_operand.hbm [shape: bf16[128,128], index: 0, kind: input, shape index: {}]
  %s1 = inlined_call_operand.hbm [shape: bf16[128,128], index: 1, kind: input, shape index: {}]
  %s2 = inlined_call_operand.hbm [shape: bf16[128,128], index: 2, kind: output, shape index: {}]
  %s3 = sld [smem:[#allocation0]]
  $region49: #{tpu_custom_call.1} parent=0
    _
  %s5 = ssub.s32 1, %s3
  %s6 = scalar_select 0, %s5, %s3
  $region1: #{tpu_custom_call.1} parent=0
    #allocation2 [shape = 'u8[32768]{0}', space=vmem, size = 0x8000, scoped, tag = 'input window, operand 0']
    #allocation3 [shape = 's32[2]{0}', space=sflag, size = 0x8, scoped, tag = 'scoped memory for tpu_custom_call.1']
    #allocation4 [shape = 's32[2]{0}', space=sflag, size = 0x8, scoped, tag = 'scoped memory for tpu_custom_call.1']
    #allocation5 [shape = 'u8[32768]{0}', space=vmem, size = 0x8000, scoped, tag = 'input window, operand 1, single buffered']
    #allocation6 [shape = 's32[1]{0}', space=sflag, size = 0x4, scoped, tag = 'scoped memory for tpu_custom_call.1']
    #allocation7 [shape = 'u8[32768]{0}', space=vmem, size = 0x8000, scoped, tag = 'output window, operand 0']
    %7 = vsyncpa [#allocation3], 0
    %s8 = scalar_lea.sflag [#allocation3], 1
    %9 = vsyncpa %s8, 0
    %10 = vsyncpa [#allocation6], 0
    %11 = vsyncpa [#allocation4], 0
    %s12 = scalar_lea.sflag [#allocation4], 1
    %13 = vsyncpa %s12, 0
    loop: start=0, step=1, limit=4
    $region2: #{tpu_custom_call.1} parent=1 // loop_pre_header
      _
    $region3: #{tpu_custom_call.1} parent=1 // loop_header
      %s15 = sphi 0, %s19
      %p16 = scmp.ge.s32.totalorder %s15, 4
      %s25 = sphi 0, %s27
      %s28 = sphi 0, %s25
      %s29 = sphi 0, %s28
      %s45 = sphi 0, %s29
      %s49 = sphi 0, %s49
      %s51 = sphi 0, %s49
      %s52 = sphi 0, %s51
      %s66 = sphi 0, %s52
      %s72 = sphi 0, %s74
      %s75 = sphi 0, %s72
      %s76 = sphi 0, %s75
      %s92 = sphi 0, %s76
    $region4: #{tpu_custom_call.1} parent=1 // loop_header_branch
      %18 = sbr.rel (%p16) target = $region8
    $region5: #{tpu_custom_call.1} parent=1 // loop_body
      %s20 = ssub.s32 %s15, 1
      %s21 = ssub.s32 %s15, 2
      %s22 = sadd.s32 %s15, 1
      %s23 = ssub.s32 %s15, %s22
      %p24 = scmp.eq.s32.totalorder %s23, 0
      %s26 = sadd.s32 %s25, 1
      %s27 = scalar_select %p24, %s25, %s26
      %p30 = pneg %p24
      %p31 = scmp.eq.s32.totalorder %s15, 1
      %p32 = por %p30, %p31
      %p33 = scmp.ne.s32.totalorder %s25, %s28
      %p34 = scmp.eq.s32.totalorder %s15, 0
      %p35 = por %p33, %p34
      %p36 = scmp.ne.s32.totalorder %s25, %s28
      %p37 = scmp.eq.s32.totalorder %s20, 1
      %p38 = por %p36, %p37
      %p39 = scmp.ne.s32.totalorder %s28, %s29
      %p40 = scmp.eq.s32.totalorder %s20, 0
      %p41 = por %p39, %p40
      %p42 = scmp.ne.s32.totalorder %s28, %s29
      %p43 = scmp.eq.s32.totalorder %s21, 1
      %p44 = por %p42, %p43
      %p46 = scmp.ne.s32.totalorder %s29, %s45
      %p47 = scmp.eq.s32.totalorder %s21, 0
      %p48 = por %p46, %p47
      %s50 = sadd.s32 %s49, 1
      %p53 = scmp.eq.s32.totalorder %s15, 1
      %p54 = scmp.ne.s32.totalorder %s49, %s51
      %p55 = scmp.eq.s32.totalorder %s15, 0
      %p56 = por %p54, %p55
      %p57 = scmp.ne.s32.totalorder %s49, %s51
      %p58 = scmp.eq.s32.totalorder %s20, 1
      %p59 = por %p57, %p58
      %p60 = scmp.ne.s32.totalorder %s51, %s52
      %p61 = scmp.eq.s32.totalorder %s20, 0
      %p62 = por %p60, %p61
      %p63 = scmp.ne.s32.totalorder %s51, %s52
      %p64 = scmp.eq.s32.totalorder %s21, 1
      %p65 = por %p63, %p64
      %p67 = scmp.ne.s32.totalorder %s52, %s66
      %p68 = scmp.eq.s32.totalorder %s21, 0
      %p69 = por %p67, %p68
      %s70 = ssub.s32 %s15, %s22
      %p71 = scmp.eq.s32.totalorder %s70, 0
      %s73 = sadd.s32 %s72, 1
      %s74 = scalar_select %p71, %s72, %s73
      %p77 = pneg %p71
      %p78 = scmp.eq.s32.totalorder %s15, 1
      %p79 = por %p77, %p78
      %p80 = scmp.ne.s32.totalorder %s72, %s75
      %p81 = scmp.eq.s32.totalorder %s15, 0
      %p82 = por %p80, %p81
      %p83 = scmp.ne.s32.totalorder %s72, %s75
      %p84 = scmp.eq.s32.totalorder %s20, 1
      %p85 = por %p83, %p84
      %p86 = scmp.ne.s32.totalorder %s75, %s76
      %p87 = scmp.eq.s32.totalorder %s20, 0
      %p88 = por %p86, %p87
      %p89 = scmp.ne.s32.totalorder %s75, %s76
      %p90 = scmp.eq.s32.totalorder %s21, 1
      %p91 = por %p89, %p90
      %p93 = scmp.ne.s32.totalorder %s76, %s92
      %p94 = scmp.eq.s32.totalorder %s21, 0
      %p95 = por %p93, %p94
      %p96 = scmp.le.s32.totalorder 1, %s15
      %p97 = scmp.lt.s32.totalorder %s15, 3
      %p98 = pnand %p96, %p97
      %p99 = pneg %p98
      // Predicated region
      $region9: #{tpu_custom_call.1} parent=5 // pred_check
        _
      $region10: #{tpu_custom_call.1} parent=5 // pred_check_branch
        %101 = sbr.rel (%p98) target = $region12
      $region11: #{tpu_custom_call.1} parent=5 // pred_region
        %s102 = ssub.s32 %s15, 1
        // Predicated region
        $region13: #{tpu_custom_call.1} parent=11 // pred_check
          %p103 = pneg %p62
        $region14: #{tpu_custom_call.1} parent=11 // pred_check_branch
          %105 = sbr.rel (%p103) target = $region16
        $region15: #{tpu_custom_call.1} parent=11 // pred_region
          %s107 = ssub.s32 1024, 1024
          %108 = vsyncadd [#allocation6], %s107
          %s109 = sshll.u32 [#allocation5], 4
          %s110 = int_to_ptr.vmem [resolvable:$true] %s109
          %115 = dma.hbm_to_vmem [thread:$0]  %s1, 1024, %s110, [#allocation6], 64, 64, 4
        $region16: #{tpu_custom_call.1} parent=11 // pred_fallthru
          _
      $region12: #{tpu_custom_call.1} parent=5 // pred_fallthru
        _
      %p116 = scmp.lt.s32.totalorder %s15, 2
      // Predicated region
      $region17: #{tpu_custom_call.1} parent=5 // pred_check
        %p117 = pneg %p116
      $region18: #{tpu_custom_call.1} parent=5 // pred_check_branch
        %119 = sbr.rel (%p117) target = $region20
      $region19: #{tpu_custom_call.1} parent=5 // pred_region
        // Predicated region
        $region21: #{tpu_custom_call.1} parent=19 // pred_check
          %p120 = pneg %p35
        $region22: #{tpu_custom_call.1} parent=19 // pred_check_branch
          %122 = sbr.rel (%p120) target = $region24
        $region23: #{tpu_custom_call.1} parent=19 // pred_region
          %s123 = sand.u32 %s25, 1
          %s124 = scalar_lea.sflag [#allocation3], %s123
          %s125 = sand.u32 %s25, 1
          %s126 = smul.addr %s125, 32
          %s127 = scalar_lea.vmem [#allocation2], %s126
          %s128 = smul.u32 8, %s15
          %s130 = ssub.s32 512, 512
          %131 = vsyncadd %s124, %s130
          %s132 = smul.addr %s128, 64
          %s133 = scalar_lea.hbm %s0, %s132
          %s134 = sshll.u32 %s127, 4
          %s135 = int_to_ptr.vmem [resolvable:$true] %s134
          %140 = dma.hbm_to_vmem [thread:$0]  %s133, 512, %s135, %s124, 64, 64, 4
        $region24: #{tpu_custom_call.1} parent=19 // pred_fallthru
          _
      $region20: #{tpu_custom_call.1} parent=5 // pred_fallthru
        _
      %p141 = scmp.le.s32.totalorder 1, %s15
      %p142 = scmp.lt.s32.totalorder %s15, 3
      %p143 = pnand %p141, %p142
      %p144 = pneg %p143
      // Predicated region
      $region25: #{tpu_custom_call.1} parent=5 // pred_check
        _
      $region26: #{tpu_custom_call.1} parent=5 // pred_check_branch
        %146 = sbr.rel (%p143) target = $region28
      $region27: #{tpu_custom_call.1} parent=5 // pred_region
        %s147 = ssub.s32 %s15, 1
        %s148 = sand.u32 %s28, 1
        %s149 = scalar_lea.sflag [#allocation3], %s148
        %s150 = sand.u32 %s28, 1
        %s151 = smul.addr %s150, 32
        %s152 = scalar_lea.vmem [#allocation2], %s151
        // Predicated region
        $region29: #{tpu_custom_call.1} parent=27 // pred_check
          %p153 = pneg %p41
        $region30: #{tpu_custom_call.1} parent=27 // pred_check_branch
          %155 = sbr.rel (%p153) target = $region32
        $region31: #{tpu_custom_call.1} parent=27 // pred_region
          %156 = dma.done %s149, 512
        $region32: #{tpu_custom_call.1} parent=27 // pred_fallthru
          _
        // Predicated region
        $region33: #{tpu_custom_call.1} parent=27 // pred_check
          %p157 = pneg %p62
        $region34: #{tpu_custom_call.1} parent=27 // pred_check_branch
          %159 = sbr.rel (%p157) target = $region36
        $region35: #{tpu_custom_call.1} parent=27 // pred_region
          %160 = dma.done [#allocation6], 1024
        $region36: #{tpu_custom_call.1} parent=27 // pred_fallthru
          _
        %s161 = sand.u32 %s28, 1
        %s162 = scalar_lea.sflag [#allocation3], %s161
        %s163 = sand.u32 %s28, 1
        %s164 = smul.addr %s163, 32
        %s165 = scalar_lea.vmem [#allocation2], %s164
        %p166 = pneg %p41
        %p167 = pneg %p38
        %p168 = pneg %p62
        %p169 = pneg %p59
        %p170 = pneg %p88
        %p171 = pneg %p85
        %s172 = sand.u32 %s75, 1
        %s173 = scalar_lea.sflag [#allocation4], %s172
        %s174 = sand.u32 %s75, 1
        %s175 = smul.addr %s174, 32
        %s176 = scalar_lea.vmem [#allocation7], %s175
        %s177 = smul.u32 8, %s20
        %s178 = smul.u32 8, %s20
        %v180 = vld [vmem:[%s152] sm:$0xf]
        %v181 = vld [vmem:[%s152 + $0x4] sm:$0xf]
        %v182 = vld [vmem:[%s152 + $0x8] sm:$0xf]
        %v183 = vld [vmem:[%s152 + $0xc] sm:$0xf]
        %v184 = vld [vmem:[%s152 + $0x10] sm:$0xf]
        %v185 = vld [vmem:[%s152 + $0x14] sm:$0xf]
        %v186 = vld [vmem:[%s152 + $0x18] sm:$0xf]
        %v187 = vld [vmem:[%s152 + $0x1c] sm:$0xf]
        %v188 = vld [vmem:[#allocation5] sm:$0xf]
        %v189 = vld [vmem:[#allocation5 + $0x4] sm:$0xf]
        %v190 = vld [vmem:[#allocation5 + $0x8] sm:$0xf]
        %v191 = vld [vmem:[#allocation5 + $0xc] sm:$0xf]
        %v192 = vld [vmem:[#allocation5 + $0x10] sm:$0xf]
        %v193 = vld [vmem:[#allocation5 + $0x14] sm:$0xf]
        %v194 = vld [vmem:[#allocation5 + $0x18] sm:$0xf]
        %v195 = vld [vmem:[#allocation5 + $0x1c] sm:$0xf]
        %v196 = vld [vmem:[#allocation5 + $0x20] sm:$0xf]
        %v197 = vld [vmem:[#allocation5 + $0x24] sm:$0xf]
        %v198 = vld [vmem:[#allocation5 + $0x28] sm:$0xf]
        %v199 = vld [vmem:[#allocation5 + $0x2c] sm:$0xf]
        %v200 = vld [vmem:[#allocation5 + $0x30] sm:$0xf]
        %v201 = vld [vmem:[#allocation5 + $0x34] sm:$0xf]
        %v202 = vld [vmem:[#allocation5 + $0x38] sm:$0xf]
        %v203 = vld [vmem:[#allocation5 + $0x3c] sm:$0xf]
        %v212 = vunpack.c.l.b16 %v180
        %v213 = vunpack.c.l.b16 %v181
        %v214 = vunpack.c.l.b16 %v182
        %v215 = vunpack.c.l.b16 %v183
        %v216 = vunpack.c.l.b16 %v184
        %v217 = vunpack.c.l.b16 %v185
        %v218 = vunpack.c.l.b16 %v186
        %v219 = vunpack.c.l.b16 %v187
        %v220 = vpack.c.b16 %v213, %v212
        %v221 = vpack.c.b16 %v215, %v214
        %v222 = vpack.c.b16 %v217, %v216
        %v223 = vpack.c.b16 %v219, %v218
        %v244 = vunpack.c.l.b16 %v188
        %v245 = vunpack.c.l.b16 %v189
        %v246 = vunpack.c.l.b16 %v190
        %v247 = vunpack.c.l.b16 %v191
        %v248 = vunpack.c.l.b16 %v192
        %v249 = vunpack.c.l.b16 %v193
        %v250 = vunpack.c.l.b16 %v194
        %v251 = vunpack.c.l.b16 %v195
        %v252 = vunpack.c.l.b16 %v196
        %v253 = vunpack.c.l.b16 %v197
        %v254 = vunpack.c.l.b16 %v198
        %v255 = vunpack.c.l.b16 %v199
        %v256 = vunpack.c.l.b16 %v200
        %v257 = vunpack.c.l.b16 %v201
        %v258 = vunpack.c.l.b16 %v202
        %v259 = vunpack.c.l.b16 %v203
        %v260 = vpack.c.b16 %v245, %v244
        %v261 = vpack.c.b16 %v247, %v246
        %v262 = vpack.c.b16 %v249, %v248
        %v263 = vpack.c.b16 %v251, %v250
        %v264 = vpack.c.b16 %v253, %v252
        %v265 = vpack.c.b16 %v255, %v254
        %v266 = vpack.c.b16 %v257, %v256
        %v267 = vpack.c.b16 %v259, %v258
        %276 = vmatprep.subr.bf16.mxu0 0
        %277 = vmatpush1.bf16.msra.mxu0 %v267
        %278 = vmatprep.subr.bf16.mxu0 0
        %279 = vmatpush1.bf16.msra.mxu0 %v266
        %280 = vmatprep.subr.bf16.mxu0 0
        %281 = vmatpush1.bf16.msra.mxu0 %v265
        %282 = vmatprep.subr.bf16.mxu0 0
        %283 = vmatpush1.bf16.msra.mxu0 %v264
        %284 = vmatprep.subr.bf16.mxu0 0
        %285 = vmatpush1.bf16.msra.mxu0 %v263
        %286 = vmatprep.subr.bf16.mxu0 0
        %287 = vmatpush1.bf16.msra.mxu0 %v262
        %288 = vmatprep.subr.bf16.mxu0 0
        %289 = vmatpush1.bf16.msra.mxu0 %v261
        %290 = vmatprep.subr.bf16.mxu0 0
        %291 = vmatpush1.bf16.msra.mxu0 %v260
        %292 = vmatprep.subr.bf16.mxu0 0
        %293 = vmatpush2.bf16.msra.mxu0 0
        %294 = vmatprep.subr.bf16.mxu0 0
        %295 = vmatpush2.bf16.msra.mxu0 0
        %296 = vmatprep.subr.bf16.mxu0 0
        %297 = vmatpush2.bf16.msra.mxu0 0
        %298 = vmatprep.subr.bf16.mxu0 0
        %299 = vmatpush2.bf16.msra.mxu0 0
        %300 = vmatprep.subr.bf16.mxu0 0
        %301 = vmatpush2.bf16.msra.mxu0 0
        %302 = vmatprep.subr.bf16.mxu0 0
        %303 = vmatpush2.bf16.msra.mxu0 0
        %304 = vmatprep.subr.bf16.mxu0 0
        %305 = vmatpush2.bf16.msra.mxu0 0
        %306 = vmatprep.subr.bf16.mxu0 0
        %307 = vmatpush2.bf16.msra.mxu0 0
        %308 = vmatprep.mubr.bf16.mxu0 0
        %309 = vmatmul.mubr.bf16.gmra.mxu0 %v220
        %v310 = vpop.f32.mrf.mxu0
        %v311 = vadd.f32 0.0, %v310
        %v312 = vpop.f32.mrf.mxu0
        %v313 = vpop.f32.mrf.mxu0
        %v314 = vadd.f32 0.0, %v313
        %v315 = vpop.f32.mrf.mxu0
        %316 = vmatprep.mubr.bf16.mxu0 0
        %317 = vmatmul.mubr.bf16.gmra.mxu0 %v221
        %v318 = vpop.f32.mrf.mxu0
        %v319 = vadd.f32 0.0, %v318
        %v320 = vpop.f32.mrf.mxu0
        %v321 = vpop.f32.mrf.mxu0
        %v322 = vadd.f32 0.0, %v321
        %v323 = vpop.f32.mrf.mxu0
        %324 = vmatprep.mubr.bf16.mxu0 0
        %325 = vmatmul.mubr.bf16.gmra.mxu0 %v222
        %v326 = vpop.f32.mrf.mxu0
        %v327 = vadd.f32 0.0, %v326
        %v328 = vpop.f32.mrf.mxu0
        %v329 = vpop.f32.mrf.mxu0
        %v330 = vadd.f32 0.0, %v329
        %v331 = vpop.f32.mrf.mxu0
        %332 = vmatprep.mubr.bf16.mxu0 0
        %333 = vmatmul.mubr.bf16.gmra.mxu0 %v223
        %v334 = vpop.f32.mrf.mxu0
        %v335 = vadd.f32 0.0, %v334
        %v336 = vpop.f32.mrf.mxu0
        %v337 = vpop.f32.mrf.mxu0
        %v338 = vadd.f32 0.0, %v337
        %v339 = vpop.f32.mrf.mxu0
        %340 = vdwg.mxu0
        %v341 = vpack.c.bf16 %v314, %v311
        %v342 = vpack.c.bf16 %v322, %v319
        %v343 = vpack.c.bf16 %v330, %v327
        %v344 = vpack.c.bf16 %v338, %v335
        %v349 = vunpack.c.l.b16 %v341
        %v350 = vunpack.c.h.b16 %v341
        %v351 = vunpack.c.l.b16 %v342
        %v352 = vunpack.c.h.b16 %v342
        %v353 = vunpack.c.l.b16 %v343
        %v354 = vunpack.c.h.b16 %v343
        %v355 = vunpack.c.l.b16 %v344
        %v356 = vunpack.c.h.b16 %v344
        %v357 = vpack.c.b16 %v349, %v349
        %v358 = vpack.c.b16 %v350, %v350
        %v359 = vpack.c.b16 %v351, %v351
        %v360 = vpack.c.b16 %v352, %v352
        %v361 = vpack.c.b16 %v353, %v353
        %v362 = vpack.c.b16 %v354, %v354
        %v363 = vpack.c.b16 %v355, %v355
        %v364 = vpack.c.b16 %v356, %v356
        %373 = vst [vmem:[%s176] sm:$0xf] %v357
        %374 = vst [vmem:[%s176 + $0x4] sm:$0xf] %v358
        %375 = vst [vmem:[%s176 + $0x8] sm:$0xf] %v359
        %376 = vst [vmem:[%s176 + $0xc] sm:$0xf] %v360
        %377 = vst [vmem:[%s176 + $0x10] sm:$0xf] %v361
        %378 = vst [vmem:[%s176 + $0x14] sm:$0xf] %v362
        %379 = vst [vmem:[%s176 + $0x18] sm:$0xf] %v363
        %380 = vst [vmem:[%s176 + $0x1c] sm:$0xf] %v364
        %s381 = sand.u32 %s75, 1
        %s382 = scalar_lea.sflag [#allocation4], %s381
        %s383 = sand.u32 %s75, 1
        %s384 = smul.addr %s383, 32
        %s385 = scalar_lea.vmem [#allocation7], %s384
        // Predicated region
        $region37: #{tpu_custom_call.1} parent=27 // pred_check
          %p386 = pneg %p85
        $region38: #{tpu_custom_call.1} parent=27 // pred_check_branch
          %388 = sbr.rel (%p386) target = $region40
        $region39: #{tpu_custom_call.1} parent=27 // pred_region
          %s389 = smul.u32 8, %s20
          %s391 = ssub.s32 512, 512
          %392 = vsyncadd %s382, %s391
          %s393 = smul.addr %s389, 64
          %s394 = scalar_lea.hbm %s2, %s393
          %s395 = sshll.u32 %s385, 4
          %s396 = int_to_ptr.vmem [resolvable:$true] %s395
          %401 = dma.vmem_to_hbm [thread:$0]  %s396, 512, %s394, %s382, 64, 64, 4
        $region40: #{tpu_custom_call.1} parent=27 // pred_fallthru
          _
      $region28: #{tpu_custom_call.1} parent=5 // pred_fallthru
        _
      %p402 = scmp.le.s32.totalorder 2, %s15
      // Predicated region
      $region41: #{tpu_custom_call.1} parent=5 // pred_check
        %p403 = pneg %p402
      $region42: #{tpu_custom_call.1} parent=5 // pred_check_branch
        %405 = sbr.rel (%p403) target = $region44
      $region43: #{tpu_custom_call.1} parent=5 // pred_region
        %s406 = ssub.s32 %s15, 2
        // Predicated region
        $region45: #{tpu_custom_call.1} parent=43 // pred_check
          %p407 = pneg %p91
        $region46: #{tpu_custom_call.1} parent=43 // pred_check_branch
          %409 = sbr.rel (%p407) target = $region48
        $region47: #{tpu_custom_call.1} parent=43 // pred_region
          %s410 = sand.u32 %s76, 1
          %s411 = scalar_lea.sflag [#allocation4], %s410
          %s412 = sand.u32 %s76, 1
          %s413 = smul.addr %s412, 32
          %s414 = scalar_lea.vmem [#allocation7], %s413
          %415 = dma.done %s411, 512
        $region48: #{tpu_custom_call.1} parent=43 // pred_fallthru
          _
      $region44: #{tpu_custom_call.1} parent=5 // pred_fallthru
        _
    $region6: #{tpu_custom_call.1} parent=1 // loop_footer
      %s19 = sadd.s32 1, %s15
    $region7: #{tpu_custom_call.1} parent=1 // loop_footer_branch
      %14 = sbr.rel target = $region3
    $region8: #{tpu_custom_call.1} parent=1 // loop_exit
      _
    %416 = vsyncpa [#allocation3], 1
    %s417 = scalar_lea.sflag [#allocation3], 1
    %418 = vsyncpa %s417, 1
    %419 = vsyncpa [#allocation6], 1
    %420 = vsyncpa [#allocation4], 1
    %s421 = scalar_lea.sflag [#allocation4], 1
    %422 = vsyncpa %s421, 1

</llo_original>
